<compile_context>
chip_gen: v6e
topology: v6e:2x2x1
jax: 0.10.0
libtpu: 0.0.40
codegen_flags: <defaults>
</compile_context>

<pallas_src>
import functools

import jax
import jax.numpy as jnp
from jax import lax
from jax.experimental import pallas as pl
from jax.experimental.pallas import tpu as pltpu
import numpy as np


def psiu_rollout_kernel(xi0_ref, w_ref, wcomb_ref, d11s_ref, wepsout_ref,
                        out_ref, xiw_scr, *, n_xi, n, l, m, batch):
    del m  # folded into the packed operand widths
    t = pl.program_id(0)

    # Load the initial state into the resident state/input slab on step 0.
    @pl.when(t == 0)
    def _():
        xiw_scr[:, :n_xi] = xi0_ref[...]

    # Drop this step's exogenous input into the w-lanes of the slab.
    xiw_scr[:, n_xi:] = w_ref[0]
    xiw = xiw_scr[...]                                            # (B, n_xi + n)

    # Single MXU pass: [xi | w] @ W_comb -> [b/Lambda | xi_next_xw | 20*u_xw]
    pre = jnp.dot(xiw, wcomb_ref[...], preferred_element_type=jnp.float32)
    b_scaled = pre[:, :l]                                         # (B, l)
    out_acc = pre[:, l:]                                          # (B, n_xi + m)

    # l-step equilibrium recursion; eps carried as a compact (B, l) value.
    col_l = lax.broadcasted_iota(jnp.int32, (batch, l), 1)
    eps = jnp.zeros((batch, l), jnp.float32)
    for i in range(l):                                            # static unroll (l small)
        d11_row = d11s_ref[pl.ds(i, 1), :]                        # (1, l) strictly lower, /Lambda[i]
        v = b_scaled[:, i:i + 1] + jnp.sum(d11_row * eps, axis=-1, keepdims=True)
        e_i = jnp.tanh(v)                                         # (B, 1)
        eps = jnp.where(col_l == i, e_i, eps)                     # scatter into lane i
        out_acc = out_acc + e_i * wepsout_ref[pl.ds(i, 1), :]     # VPU broadcast-FMA

    out_ref[0] = out_acc                                          # [xi_next | 20*u]
    xiw_scr[:, :n_xi] = out_acc[:, :n_xi]                         # carry xi to step t+1


class PsiU:
    def __init__(self, n, m, n_xi, l, std_ini_param=None, key=None):
        self.n, self.m, self.n_xi, self.l = n, m, n_xi, l
        std = 0.1 if std_ini_param is None else std_ini_param
        self.epsilon = 0.001
        if key is None:
            key = jax.random.PRNGKey(0)
        kX, kY, kB2, kC2, kD21, kD22, kD12 = jax.random.split(key, 7)
        self.X = jax.random.normal(kX, (2 * n_xi + l, 2 * n_xi + l), jnp.float32) * std
        self.Y = jax.random.normal(kY, (n_xi, n_xi), jnp.float32) * std
        self.B2 = jax.random.normal(kB2, (n_xi, n), jnp.float32) * std
        self.C2 = jax.random.normal(kC2, (m, n_xi), jnp.float32) * std
        self.D21 = jax.random.normal(kD21, (m, l), jnp.float32) * std
        self.D22 = jax.random.normal(kD22, (m, n), jnp.float32) * std
        self.D12 = jax.random.normal(kD12, (l, n), jnp.float32) * std
        self._calls = {}
        self.set_model_param()

    def set_model_param(self):
        n, m, n_xi, l = self.n, self.m, self.n_xi, self.l
        H = self.X.T @ self.X + self.epsilon * jnp.eye(2 * n_xi + l, dtype=jnp.float32)
        H11 = H[:n_xi, :n_xi]
        H22 = H[n_xi:n_xi + l, n_xi:n_xi + l]
        H21 = H[n_xi:n_xi + l, :n_xi]
        H31 = H[n_xi + l:, :n_xi]
        H32 = H[n_xi + l:, n_xi:n_xi + l]
        H33 = H[n_xi + l:, n_xi + l:]
        P = H33
        self.F = H31
        self.B1 = H32
        self.E = 0.5 * (H11 + P + self.Y - self.Y.T)
        self.Lambda = 0.5 * jnp.diag(H22)
        self.D11 = -jnp.tril(H22, k=-1)
        self.C1 = -H21
        self.E_inv = jnp.linalg.inv(self.E)       # one-time param derivation

        # ---- one-time packing for the kernel ----
        inv_lam = 1.0 / self.Lambda               # (l,)
        no = n_xi + m
        EiF = self.E_inv @ self.F
        EiB1 = self.E_inv @ self.B1
        EiB2 = self.E_inv @ self.B2

        # W_comb: (n_xi+n, l+n_xi+m). [xi|w] -> [b/Lambda | xi_next_xw | 20*u_xw]
        w_comb = jnp.zeros((n_xi + n, l + no), jnp.float32)
        w_comb = w_comb.at[:n_xi, :l].set(self.C1.T * inv_lam[None, :])
        w_comb = w_comb.at[n_xi:, :l].set(self.D12.T * inv_lam[None, :])
        w_comb = w_comb.at[:n_xi, l:l + n_xi].set(EiF.T)
        w_comb = w_comb.at[n_xi:, l:l + n_xi].set(EiB2.T)
        w_comb = w_comb.at[:n_xi, l + n_xi:].set(20.0 * self.C2.T)
        w_comb = w_comb.at[n_xi:, l + n_xi:].set(20.0 * self.D22.T)
        self.W_comb = w_comb

        # D11 rows pre-scaled by 1/Lambda[i]; compact (l, l) strictly-lower frame.
        self.D11s = self.D11 * inv_lam[:, None]

        # Per-eps output rows: eps_i * [ (E^-1 B1)_col_i | 20*D21_col_i ]
        w_eps = jnp.zeros((l, no), jnp.float32)
        w_eps = w_eps.at[:, :n_xi].set(EiB1.T)
        w_eps = w_eps.at[:, n_xi:].set(20.0 * self.D21.T)
        self.W_eps_out = w_eps

    def _get_call(self, T, B):
        key = (T, B)
        if key in self._calls:
            return self._calls[key]
        n, m, n_xi, l = self.n, self.m, self.n_xi, self.l
        no = n_xi + m
        kern = functools.partial(psiu_rollout_kernel, n_xi=n_xi, n=n, l=l, m=m, batch=B)
        cost = pl.CostEstimate(
            flops=T * B * (2 * (n_xi + n) * (l + no) + 2 * l * no),
            transcendentals=T * B * l,
            bytes_accessed=4 * ((n_xi + n) * (l + no) + l * l + l * no
                                + B * n_xi + T * B * n + T * B * no),
        )
        call = pl.pallas_call(
            kern,
            out_shape=jax.ShapeDtypeStruct((T, B, no), jnp.float32),
            grid=(T,),
            in_specs=[
                pl.BlockSpec((B, n_xi), lambda t: (0, 0)),          # xi0 (resident)
                pl.BlockSpec((1, B, n), lambda t: (t, 0, 0)),       # w trajectory, per step
                pl.BlockSpec((n_xi + n, l + no), lambda t: (0, 0)),  # W_comb (resident)
                pl.BlockSpec((l, l), lambda t: (0, 0)),              # D11s  (resident)
                pl.BlockSpec((l, no), lambda t: (0, 0)),             # W_eps_out (resident)
            ],
            out_specs=pl.BlockSpec((1, B, no), lambda t: (t, 0, 0)),
            scratch_shapes=[pltpu.VMEM((B, n_xi + n), jnp.float32)],  # [xi | w] slab, persists
            compiler_params=pltpu.CompilerParams(dimension_semantics=("arbitrary",)),
            cost_estimate=cost,
        )

        def run(xi0, w_traj, w_comb, d11s, w_eps_out):
            out = call(xi0, w_traj, w_comb, d11s, w_eps_out)        # (T, B, n_xi+m)
            return out[..., n_xi:], out[..., :n_xi]                 # (20*u, xi) trajectories

        self._calls[key] = jax.jit(run)
        return self._calls[key]

    def rollout(self, w_traj, xi0):
        """Run T steps in one pallas_call. w_traj: (T, B, n) or (T, n); xi0: (B, n_xi) or (n_xi,)."""
        w_traj = jnp.asarray(w_traj, jnp.float32)
        if w_traj.ndim == 2:
            w_traj = w_traj[:, None, :]
        xi0 = jnp.asarray(xi0, jnp.float32)
        if xi0.ndim == 1:
            xi0 = xi0[None, :]
        T, B, _ = w_traj.shape
        run = self._get_call(T, B)
        return run(xi0, w_traj, self.W_comb, self.D11s, self.W_eps_out)  # (u20, xi) trajs

    def forward(self, t, w, xi):
        """Single step, identical semantics to the PyTorch module: returns (20*u, xi_)."""
        del t  # unused, as in the reference module
        run = self._get_call(1, 1)
        u20, xi_next = run(
            jnp.reshape(jnp.asarray(xi, jnp.float32), (1, self.n_xi)),
            jnp.reshape(jnp.asarray(w, jnp.float32), (1, 1, self.n)),
            self.W_comb, self.D11s, self.W_eps_out)
        return u20[0, 0], xi_next[0, 0]


def psiu_reference_rollout(model, w_traj, xi0):
    """Pure-NumPy reference replicating the PyTorch forward, step by step."""
    C1 = np.asarray(model.C1); D11 = np.asarray(model.D11); D12 = np.asarray(model.D12)
    Lam = np.asarray(model.Lambda); F = np.asarray(model.F); B1 = np.asarray(model.B1)
    B2 = np.asarray(model.B2); E_inv = np.asarray(model.E_inv)
    C2 = np.asarray(model.C2); D21 = np.asarray(model.D21); D22 = np.asarray(model.D22)
    w_traj = np.asarray(w_traj, np.float32)
    xi0 = np.asarray(xi0, np.float32)
    T, B, _ = w_traj.shape
    l, m, n_xi = model.l, model.m, model.n_xi
    u_out = np.zeros((T, B, m), np.float32)
    xi_out = np.zeros((T, B, n_xi), np.float32)
    for b in range(B):
        xi = xi0[b].copy()
        for t in range(T):
            w = w_traj[t, b]
            eps = np.zeros(l, np.float32)
            for i in range(l):
                v = C1[i] @ xi + D11[i] @ eps + D12[i] @ w
                eps[i] = np.tanh(v / Lam[i])
            xi_new = E_inv @ (F @ xi + B1 @ eps + B2 @ w)
            u = C2 @ xi + D21 @ eps + D22 @ w
            u_out[t, b] = 20.0 * u
            xi_out[t, b] = xi_new
            xi = xi_new
    return u_out, xi_out


if __name__ == "__main__":
    # Small shapes consistent with the module's forward (1-D w of size n, 1-D xi of size n_xi),
    # batched over B independent sequences and rolled out over T time steps.
    n, m, n_xi, l = 4, 4, 8, 8
    B, T = 2, 16

    key = jax.random.PRNGKey(0)
    k_model, k_w, k_xi = jax.random.split(key, 3)

    model = PsiU(n, m, n_xi, l, key=k_model)
    w_traj = jax.random.normal(k_w, (T, B, n), jnp.float32)
    xi0 = jax.random.normal(k_xi, (B, n_xi), jnp.float32)

    # Full-trajectory kernel (grid=(T,), resident weights, VMEM-carried state).
    u_traj, xi_traj = model.rollout(w_traj, xi0)
    u_traj = jax.block_until_ready(u_traj)
    xi_traj = jax.block_until_ready(xi_traj)

    u_ref, xi_ref = psiu_reference_rollout(model, w_traj, xi0)
    np.testing.assert_allclose(np.asarray(u_traj), u_ref, rtol=1e-3, atol=1e-4)
    np.testing.assert_allclose(np.asarray(xi_traj), xi_ref, rtol=1e-3, atol=1e-4)

    # Single-step forward (original module semantics).
    u1, xi1 = model.forward(0, w_traj[0, 0], xi0[0])
    u1 = jax.block_until_ready(u1)
    xi1 = jax.block_until_ready(xi1)
    u1_ref, xi1_ref = psiu_reference_rollout(model, w_traj[0:1, 0:1], xi0[0:1])
    np.testing.assert_allclose(np.asarray(u1), u1_ref[0, 0], rtol=1e-3, atol=1e-4)
    np.testing.assert_allclose(np.asarray(xi1), xi1_ref[0, 0], rtol=1e-3, atol=1e-4)

    print("KERNEL_OK")
</pallas_src>

<mosaic_0001>
module attributes {stable_mosaic.version = 11 : i64} {
  func.func @psiu_rollout_kernel(%arg0: i32, %arg1: memref<2x8xf32, #tpu.memory_space<vmem>>, %arg2: memref<1x2x4xf32, #tpu.memory_space<vmem>>, %arg3: memref<12x20xf32, #tpu.memory_space<vmem>>, %arg4: memref<8x8xf32, #tpu.memory_space<vmem>>, %arg5: memref<8x12xf32, #tpu.memory_space<vmem>>, %arg6: memref<1x2x12xf32, #tpu.memory_space<vmem>>, %arg7: memref<2x12xf32, #tpu.memory_space<vmem>>) attributes {dimension_semantics = [#tpu.dimension_semantics<arbitrary>], iteration_bounds = array<i64: 16>, scalar_prefetch = 0 : i64, scratch_operands = 1 : i64, tpu.core_type = #tpu.core_type<tc>, window_params = [{pipeline_mode = #tpu.pipeline_mode<synchronous>, transform_indices = @transform_0, window_bounds = array<i64: 2, 8>}, {transform_indices = @transform_1, window_bounds = array<i64: 1, 2, 4>}, {pipeline_mode = #tpu.pipeline_mode<synchronous>, transform_indices = @transform_2, window_bounds = array<i64: 12, 20>}, {pipeline_mode = #tpu.pipeline_mode<synchronous>, transform_indices = @transform_3, window_bounds = array<i64: 8, 8>}, {pipeline_mode = #tpu.pipeline_mode<synchronous>, transform_indices = @transform_4, window_bounds = array<i64: 8, 12>}, {transform_indices = @transform_5, window_bounds = array<i64: 1, 2, 12>}]} {
    %c0_i32 = arith.constant 0 : i32
    %0 = arith.cmpi eq, %arg0, %c0_i32 : i32
    %1 = arith.extui %0 : i1 to i32
    %c0_i32_0 = arith.constant 0 : i32
    %2 = arith.cmpi ne, %1, %c0_i32_0 : i32
    scf.if %2 {
      %c0_48 = arith.constant 0 : index
      %c0_49 = arith.constant 0 : index
      %157 = vector.load %arg1[%c0_48, %c0_49] : memref<2x8xf32, #tpu.memory_space<vmem>>, vector<2x8xf32>
      %c0_50 = arith.constant 0 : index
      %c0_51 = arith.constant 0 : index
      %158 = vector.load %arg7[%c0_50, %c0_51] : memref<2x12xf32, #tpu.memory_space<vmem>>, vector<2x8xf32>
      tpu.vector_store %arg7[%c0_50, %c0_51], %157 {strides = array<i32>} : memref<2x12xf32, #tpu.memory_space<vmem>>, vector<2x8xf32>,
    } else {
    }
    %c0 = arith.constant 0 : index
    %c0_1 = arith.constant 0 : index
    %c0_2 = arith.constant 0 : index
    %3 = vector.load %arg2[%c0, %c0_1, %c0_2] : memref<1x2x4xf32, #tpu.memory_space<vmem>>, vector<1x2x4xf32>
    %4 = vector.shape_cast %3 : vector<1x2x4xf32> to vector<2x4xf32>
    %c0_3 = arith.constant 0 : index
    %c8 = arith.constant 8 : index
    %5 = vector.load %arg7[%c0_3, %c8] : memref<2x12xf32, #tpu.memory_space<vmem>>, vector<2x4xf32>
    tpu.vector_store %arg7[%c0_3, %c8], %4 {strides = array<i32>} : memref<2x12xf32, #tpu.memory_space<vmem>>, vector<2x4xf32>,
    %c0_4 = arith.constant 0 : index
    %c0_5 = arith.constant 0 : index
    %6 = vector.load %arg7[%c0_4, %c0_5] : memref<2x12xf32, #tpu.memory_space<vmem>>, vector<2x12xf32>
    %c0_6 = arith.constant 0 : index
    %c0_7 = arith.constant 0 : index
    %7 = vector.load %arg3[%c0_6, %c0_7] : memref<12x20xf32, #tpu.memory_space<vmem>>, vector<12x20xf32>
    %cst = arith.constant dense<0.000000e+00> : vector<2x20xf32>
    %8 = tpu.matmul %6, %7, %cst {dimension_numbers = #tpu.dot_dimension_numbers<[1], [0], [0], [1], [0, 0, 1, 1], [], []>} : vector<2x12xf32>, vector<12x20xf32>, vector<2x20xf32> -> vector<2x20xf32>
    %9 = vector.extract_strided_slice %8 {offsets = [0, 0], sizes = [2, 8], strides = [1, 1]} : vector<2x20xf32> to vector<2x8xf32>
    %10 = vector.extract_strided_slice %8 {offsets = [0, 8], sizes = [2, 12], strides = [1, 1]} : vector<2x20xf32> to vector<2x12xf32>
    %11 = tpu.iota {dimensions = array<i32: 1>} : vector<2x8xi32>
    %cst_8 = arith.constant 0.000000e+00 : f32
    %12 = vector.broadcast %cst_8 : f32 to vector<2x8xf32>
    %c0_9 = arith.constant 0 : index
    %c0_10 = arith.constant 0 : index
    %13 = vector.load %arg4[%c0_9, %c0_10] : memref<8x8xf32, #tpu.memory_space<vmem>>, vector<1x8xf32>
    %14 = vector.extract_strided_slice %9 {offsets = [0, 0], sizes = [2, 1], strides = [1, 1]} : vector<2x8xf32> to vector<2x1xf32>
    %15 = vector.broadcast %13 : vector<1x8xf32> to vector<2x8xf32>
    %16 = arith.mulf %15, %12 : vector<2x8xf32>
    %cst_11 = arith.constant dense<0.000000e+00> : vector<2xf32>
    %17 = vector.multi_reduction <add>, %16, %cst_11 [1] : vector<2x8xf32> to vector<2xf32>
    %18 = vector.shape_cast %17 : vector<2xf32> to vector<2x1xf32>
    %19 = arith.addf %14, %18 : vector<2x1xf32>
    %20 = math.tanh %19 : vector<2x1xf32>
    %c0_i32_12 = arith.constant 0 : i32
    %21 = vector.broadcast %c0_i32_12 : i32 to vector<2x8xi32>
    %22 = arith.cmpi eq, %11, %21 : vector<2x8xi32>
    %23 = vector.shape_cast %20 : vector<2x1xf32> to vector<2x1xf32>
    %24 = vector.broadcast %23 : vector<2x1xf32> to vector<2x8xf32>
    %25 = arith.select %22, %24, %12 : vector<2x8xi1>, vector<2x8xf32>
    %c0_13 = arith.constant 0 : index
    %c0_14 = arith.constant 0 : index
    %26 = vector.load %arg5[%c0_13, %c0_14] : memref<8x12xf32, #tpu.memory_space<vmem>>, vector<1x12xf32>
    %27 = vector.broadcast %20 : vector<2x1xf32> to vector<2x12xf32>
    %28 = vector.broadcast %26 : vector<1x12xf32> to vector<2x12xf32>
    %29 = arith.mulf %27, %28 : vector<2x12xf32>
    %30 = arith.addf %10, %29 : vector<2x12xf32>
    %c1 = arith.constant 1 : index
    %c0_15 = arith.constant 0 : index
    %31 = vector.load %arg4[%c1, %c0_15] : memref<8x8xf32, #tpu.memory_space<vmem>>, vector<1x8xf32>
    %32 = vector.extract_strided_slice %9 {offsets = [0, 1], sizes = [2, 1], strides = [1, 1]} : vector<2x8xf32> to vector<2x1xf32>
    %33 = vector.broadcast %31 : vector<1x8xf32> to vector<2x8xf32>
    %34 = arith.mulf %33, %25 : vector<2x8xf32>
    %cst_16 = arith.constant dense<0.000000e+00> : vector<2xf32>
    %35 = vector.multi_reduction <add>, %34, %cst_16 [1] : vector<2x8xf32> to vector<2xf32>
    %36 = vector.shape_cast %35 : vector<2xf32> to vector<2x1xf32>
    %37 = arith.addf %32, %36 : vector<2x1xf32>
    %38 = math.tanh %37 : vector<2x1xf32>
    %c1_i32 = arith.constant 1 : i32
    %39 = vector.broadcast %c1_i32 : i32 to vector<2x8xi32>
    %40 = arith.cmpi eq, %11, %39 : vector<2x8xi32>
    %41 = vector.shape_cast %38 : vector<2x1xf32> to vector<2x1xf32>
    %42 = vector.broadcast %41 : vector<2x1xf32> to vector<2x8xf32>
    %43 = arith.select %40, %42, %25 : vector<2x8xi1>, vector<2x8xf32>
    %c1_17 = arith.constant 1 : index
    %c0_18 = arith.constant 0 : index
    %44 = vector.load %arg5[%c1_17, %c0_18] : memref<8x12xf32, #tpu.memory_space<vmem>>, vector<1x12xf32>
    %45 = vector.broadcast %38 : vector<2x1xf32> to vector<2x12xf32>
    %46 = vector.broadcast %44 : vector<1x12xf32> to vector<2x12xf32>
    %47 = arith.mulf %45, %46 : vector<2x12xf32>
    %48 = arith.addf %30, %47 : vector<2x12xf32>
    %c2 = arith.constant 2 : index
    %c0_19 = arith.constant 0 : index
    %49 = vector.load %arg4[%c2, %c0_19] : memref<8x8xf32, #tpu.memory_space<vmem>>, vector<1x8xf32>
    %50 = vector.extract_strided_slice %9 {offsets = [0, 2], sizes = [2, 1], strides = [1, 1]} : vector<2x8xf32> to vector<2x1xf32>
    %51 = vector.broadcast %49 : vector<1x8xf32> to vector<2x8xf32>
    %52 = arith.mulf %51, %43 : vector<2x8xf32>
    %cst_20 = arith.constant dense<0.000000e+00> : vector<2xf32>
    %53 = vector.multi_reduction <add>, %52, %cst_20 [1] : vector<2x8xf32> to vector<2xf32>
    %54 = vector.shape_cast %53 : vector<2xf32> to vector<2x1xf32>
    %55 = arith.addf %50, %54 : vector<2x1xf32>
    %56 = math.tanh %55 : vector<2x1xf32>
    %c2_i32 = arith.constant 2 : i32
    %57 = vector.broadcast %c2_i32 : i32 to vector<2x8xi32>
    %58 = arith.cmpi eq, %11, %57 : vector<2x8xi32>
    %59 = vector.shape_cast %56 : vector<2x1xf32> to vector<2x1xf32>
    %60 = vector.broadcast %59 : vector<2x1xf32> to vector<2x8xf32>
    %61 = arith.select %58, %60, %43 : vector<2x8xi1>, vector<2x8xf32>
    %c2_21 = arith.constant 2 : index
    %c0_22 = arith.constant 0 : index
    %62 = vector.load %arg5[%c2_21, %c0_22] : memref<8x12xf32, #tpu.memory_space<vmem>>, vector<1x12xf32>
    %63 = vector.broadcast %56 : vector<2x1xf32> to vector<2x12xf32>
    %64 = vector.broadcast %62 : vector<1x12xf32> to vector<2x12xf32>
    %65 = arith.mulf %63, %64 : vector<2x12xf32>
    %66 = arith.addf %48, %65 : vector<2x12xf32>
    %c3 = arith.constant 3 : index
    %c0_23 = arith.constant 0 : index
    %67 = vector.load %arg4[%c3, %c0_23] : memref<8x8xf32, #tpu.memory_space<vmem>>, vector<1x8xf32>
    %68 = vector.extract_strided_slice %9 {offsets = [0, 3], sizes = [2, 1], strides = [1, 1]} : vector<2x8xf32> to vector<2x1xf32>
    %69 = vector.broadcast %67 : vector<1x8xf32> to vector<2x8xf32>
    %70 = arith.mulf %69, %61 : vector<2x8xf32>
    %cst_24 = arith.constant dense<0.000000e+00> : vector<2xf32>
    %71 = vector.multi_reduction <add>, %70, %cst_24 [1] : vector<2x8xf32> to vector<2xf32>
    %72 = vector.shape_cast %71 : vector<2xf32> to vector<2x1xf32>
    %73 = arith.addf %68, %72 : vector<2x1xf32>
    %74 = math.tanh %73 : vector<2x1xf32>
    %c3_i32 = arith.constant 3 : i32
    %75 = vector.broadcast %c3_i32 : i32 to vector<2x8xi32>
    %76 = arith.cmpi eq, %11, %75 : vector<2x8xi32>
    %77 = vector.shape_cast %74 : vector<2x1xf32> to vector<2x1xf32>
    %78 = vector.broadcast %77 : vector<2x1xf32> to vector<2x8xf32>
    %79 = arith.select %76, %78, %61 : vector<2x8xi1>, vector<2x8xf32>
    %c3_25 = arith.constant 3 : index
    %c0_26 = arith.constant 0 : index
    %80 = vector.load %arg5[%c3_25, %c0_26] : memref<8x12xf32, #tpu.memory_space<vmem>>, vector<1x12xf32>
    %81 = vector.broadcast %74 : vector<2x1xf32> to vector<2x12xf32>
    %82 = vector.broadcast %80 : vector<1x12xf32> to vector<2x12xf32>
    %83 = arith.mulf %81, %82 : vector<2x12xf32>
    %84 = arith.addf %66, %83 : vector<2x12xf32>
    %c4 = arith.constant 4 : index
    %c0_27 = arith.constant 0 : index
    %85 = vector.load %arg4[%c4, %c0_27] : memref<8x8xf32, #tpu.memory_space<vmem>>, vector<1x8xf32>
    %86 = vector.extract_strided_slice %9 {offsets = [0, 4], sizes = [2, 1], strides = [1, 1]} : vector<2x8xf32> to vector<2x1xf32>
    %87 = vector.broadcast %85 : vector<1x8xf32> to vector<2x8xf32>
    %88 = arith.mulf %87, %79 : vector<2x8xf32>
    %cst_28 = arith.constant dense<0.000000e+00> : vector<2xf32>
    %89 = vector.multi_reduction <add>, %88, %cst_28 [1] : vector<2x8xf32> to vector<2xf32>
    %90 = vector.shape_cast %89 : vector<2xf32> to vector<2x1xf32>
    %91 = arith.addf %86, %90 : vector<2x1xf32>
    %92 = math.tanh %91 : vector<2x1xf32>
    %c4_i32 = arith.constant 4 : i32
    %93 = vector.broadcast %c4_i32 : i32 to vector<2x8xi32>
    %94 = arith.cmpi eq, %11, %93 : vector<2x8xi32>
    %95 = vector.shape_cast %92 : vector<2x1xf32> to vector<2x1xf32>
    %96 = vector.broadcast %95 : vector<2x1xf32> to vector<2x8xf32>
    %97 = arith.select %94, %96, %79 : vector<2x8xi1>, vector<2x8xf32>
    %c4_29 = arith.constant 4 : index
    %c0_30 = arith.constant 0 : index
    %98 = vector.load %arg5[%c4_29, %c0_30] : memref<8x12xf32, #tpu.memory_space<vmem>>, vector<1x12xf32>
    %99 = vector.broadcast %92 : vector<2x1xf32> to vector<2x12xf32>
    %100 = vector.broadcast %98 : vector<1x12xf32> to vector<2x12xf32>
    %101 = arith.mulf %99, %100 : vector<2x12xf32>
    %102 = arith.addf %84, %101 : vector<2x12xf32>
    %c5 = arith.constant 5 : index
    %c0_31 = arith.constant 0 : index
    %103 = vector.load %arg4[%c5, %c0_31] : memref<8x8xf32, #tpu.memory_space<vmem>>, vector<1x8xf32>
    %104 = vector.extract_strided_slice %9 {offsets = [0, 5], sizes = [2, 1], strides = [1, 1]} : vector<2x8xf32> to vector<2x1xf32>
    %105 = vector.broadcast %103 : vector<1x8xf32> to vector<2x8xf32>
    %106 = arith.mulf %105, %97 : vector<2x8xf32>
    %cst_32 = arith.constant dense<0.000000e+00> : vector<2xf32>
    %107 = vector.multi_reduction <add>, %106, %cst_32 [1] : vector<2x8xf32> to vector<2xf32>
    %108 = vector.shape_cast %107 : vector<2xf32> to vector<2x1xf32>
    %109 = arith.addf %104, %108 : vector<2x1xf32>
    %110 = math.tanh %109 : vector<2x1xf32>
    %c5_i32 = arith.constant 5 : i32
    %111 = vector.broadcast %c5_i32 : i32 to vector<2x8xi32>
    %112 = arith.cmpi eq, %11, %111 : vector<2x8xi32>
    %113 = vector.shape_cast %110 : vector<2x1xf32> to vector<2x1xf32>
    %114 = vector.broadcast %113 : vector<2x1xf32> to vector<2x8xf32>
    %115 = arith.select %112, %114, %97 : vector<2x8xi1>, vector<2x8xf32>
    %c5_33 = arith.constant 5 : index
    %c0_34 = arith.constant 0 : index
    %116 = vector.load %arg5[%c5_33, %c0_34] : memref<8x12xf32, #tpu.memory_space<vmem>>, vector<1x12xf32>
    %117 = vector.broadcast %110 : vector<2x1xf32> to vector<2x12xf32>
    %118 = vector.broadcast %116 : vector<1x12xf32> to vector<2x12xf32>
    %119 = arith.mulf %117, %118 : vector<2x12xf32>
    %120 = arith.addf %102, %119 : vector<2x12xf32>
    %c6 = arith.constant 6 : index
    %c0_35 = arith.constant 0 : index
    %121 = vector.load %arg4[%c6, %c0_35] : memref<8x8xf32, #tpu.memory_space<vmem>>, vector<1x8xf32>
    %122 = vector.extract_strided_slice %9 {offsets = [0, 6], sizes = [2, 1], strides = [1, 1]} : vector<2x8xf32> to vector<2x1xf32>
    %123 = vector.broadcast %121 : vector<1x8xf32> to vector<2x8xf32>
    %124 = arith.mulf %123, %115 : vector<2x8xf32>
    %cst_36 = arith.constant dense<0.000000e+00> : vector<2xf32>
    %125 = vector.multi_reduction <add>, %124, %cst_36 [1] : vector<2x8xf32> to vector<2xf32>
    %126 = vector.shape_cast %125 : vector<2xf32> to vector<2x1xf32>
    %127 = arith.addf %122, %126 : vector<2x1xf32>
    %128 = math.tanh %127 : vector<2x1xf32>
    %c6_i32 = arith.constant 6 : i32
    %129 = vector.broadcast %c6_i32 : i32 to vector<2x8xi32>
    %130 = arith.cmpi eq, %11, %129 : vector<2x8xi32>
    %131 = vector.shape_cast %128 : vector<2x1xf32> to vector<2x1xf32>
    %132 = vector.broadcast %131 : vector<2x1xf32> to vector<2x8xf32>
    %133 = arith.select %130, %132, %115 : vector<2x8xi1>, vector<2x8xf32>
    %c6_37 = arith.constant 6 : index
    %c0_38 = arith.constant 0 : index
    %134 = vector.load %arg5[%c6_37, %c0_38] : memref<8x12xf32, #tpu.memory_space<vmem>>, vector<1x12xf32>
    %135 = vector.broadcast %128 : vector<2x1xf32> to vector<2x12xf32>
    %136 = vector.broadcast %134 : vector<1x12xf32> to vector<2x12xf32>
    %137 = arith.mulf %135, %136 : vector<2x12xf32>
    %138 = arith.addf %120, %137 : vector<2x12xf32>
    %c7 = arith.constant 7 : index
    %c0_39 = arith.constant 0 : index
    %139 = vector.load %arg4[%c7, %c0_39] : memref<8x8xf32, #tpu.memory_space<vmem>>, vector<1x8xf32>
    %140 = vector.extract_strided_slice %9 {offsets = [0, 7], sizes = [2, 1], strides = [1, 1]} : vector<2x8xf32> to vector<2x1xf32>
    %141 = vector.broadcast %139 : vector<1x8xf32> to vector<2x8xf32>
    %142 = arith.mulf %141, %133 : vector<2x8xf32>
    %cst_40 = arith.constant dense<0.000000e+00> : vector<2xf32>
    %143 = vector.multi_reduction <add>, %142, %cst_40 [1] : vector<2x8xf32> to vector<2xf32>
    %144 = vector.shape_cast %143 : vector<2xf32> to vector<2x1xf32>
    %145 = arith.addf %140, %144 : vector<2x1xf32>
    %146 = math.tanh %145 : vector<2x1xf32>
    %c7_41 = arith.constant 7 : index
    %c0_42 = arith.constant 0 : index
    %147 = vector.load %arg5[%c7_41, %c0_42] : memref<8x12xf32, #tpu.memory_space<vmem>>, vector<1x12xf32>
    %148 = vector.broadcast %146 : vector<2x1xf32> to vector<2x12xf32>
    %149 = vector.broadcast %147 : vector<1x12xf32> to vector<2x12xf32>
    %150 = arith.mulf %148, %149 : vector<2x12xf32>
    %151 = arith.addf %138, %150 : vector<2x12xf32>
    %c0_43 = arith.constant 0 : index
    %c0_44 = arith.constant 0 : index
    %c0_45 = arith.constant 0 : index
    %152 = vector.load %arg6[%c0_43, %c0_44, %c0_45] : memref<1x2x12xf32, #tpu.memory_space<vmem>>, vector<1x2x12xf32>
    %153 = vector.shape_cast %152 : vector<1x2x12xf32> to vector<2x12xf32>
    %154 = vector.shape_cast %151 : vector<2x12xf32> to vector<1x2x12xf32>
    tpu.vector_store %arg6[%c0_43, %c0_44, %c0_45], %154 {strides = array<i32>} : memref<1x2x12xf32, #tpu.memory_space<vmem>>, vector<1x2x12xf32>,
    %155 = vector.extract_strided_slice %151 {offsets = [0, 0], sizes = [2, 8], strides = [1, 1]} : vector<2x12xf32> to vector<2x8xf32>
    %c0_46 = arith.constant 0 : index
    %c0_47 = arith.constant 0 : index
    %156 = vector.load %arg7[%c0_46, %c0_47] : memref<2x12xf32, #tpu.memory_space<vmem>>, vector<2x8xf32>
    tpu.vector_store %arg7[%c0_46, %c0_47], %155 {strides = array<i32>} : memref<2x12xf32, #tpu.memory_space<vmem>>, vector<2x8xf32>,
    return
  }
  func.func @transform_0(%arg0: i32) -> (i32, i32) {
    %c0_i32 = arith.constant 0 : i32
    %c0_i32_0 = arith.constant 0 : i32
    %c0_i32_1 = arith.constant 0 : i32
    return %c0_i32, %c0_i32_0 : i32, i32
  }
  func.func @transform_1(%arg0: i32) -> (i32, i32, i32) {
    %c0_i32 = arith.constant 0 : i32
    %c0_i32_0 = arith.constant 0 : i32
    %c0_i32_1 = arith.constant 0 : i32
    return %arg0, %c0_i32, %c0_i32_0 : i32, i32, i32
  }
  func.func @transform_2(%arg0: i32) -> (i32, i32) {
    %c0_i32 = arith.constant 0 : i32
    %c0_i32_0 = arith.constant 0 : i32
    %c0_i32_1 = arith.constant 0 : i32
    return %c0_i32, %c0_i32_0 : i32, i32
  }
  func.func @transform_3(%arg0: i32) -> (i32, i32) {
    %c0_i32 = arith.constant 0 : i32
    %c0_i32_0 = arith.constant 0 : i32
    %c0_i32_1 = arith.constant 0 : i32
    return %c0_i32, %c0_i32_0 : i32, i32
  }
  func.func @transform_4(%arg0: i32) -> (i32, i32) {
    %c0_i32 = arith.constant 0 : i32
    %c0_i32_0 = arith.constant 0 : i32
    %c0_i32_1 = arith.constant 0 : i32
    return %c0_i32, %c0_i32_0 : i32, i32
  }
  func.func @transform_5(%arg0: i32) -> (i32, i32, i32) {
    %c0_i32 = arith.constant 0 : i32
    %c0_i32_0 = arith.constant 0 : i32
    %c0_i32_1 = arith.constant 0 : i32
    return %arg0, %c0_i32, %c0_i32_0 : i32, i32, i32
  }
}

</mosaic_0001>

<llo_original>
// kernel: run.1
$region0: #{run.1}
  #allocation0 [shape = 'u32[]', space=smem, size = 0x4, offset = 0x4, fixed_abs, tag = 'smem constant byte address 0x4 - core index']
  #allocation1 [shape = 'u32[144,128]{1,0:T(1,128)}', space=vmem, size = 0x12000, scoped, tag = 'internal scratch']
  #allocation2 [shape = 'f32[2,12]{1,0:T(2,128)}', space=vmem, size = 0x400, scoped, tag = 'scratch operand']
  %s0 = inlined_call_operand.vmem [shape: f32[2,8], index: 0, kind: input, shape index: {}]
  %s1 = inlined_call_operand.vmem [shape: f32[16,2,4], index: 1, kind: input, shape index: {}]
  %s2 = inlined_call_operand.vmem [shape: f32[12,20], index: 2, kind: input, shape index: {}]
  %s3 = inlined_call_operand.vmem [shape: f32[8,8], index: 3, kind: input, shape index: {}]
  %s4 = inlined_call_operand.vmem [shape: f32[8,12], index: 4, kind: input, shape index: {}]
  %s5 = inlined_call_operand.vmem [shape: f32[16,2,12], index: 5, kind: output, shape index: {}]
  %s6 = sld [smem:[#allocation0]]
  $region57: #{run.1} parent=0
    _
  %s8 = ssub.s32 1, %s6
  %s9 = scalar_select 0, %s8, %s6
  loop: start=0, step=1, limit=18
  $region2: #{run.1} parent=0 // loop_pre_header
    _
  $region3: #{run.1} parent=0 // loop_header
    %s11 = sphi 0, %s15
    %p12 = scmp.ge.s32.totalorder %s11, 18
    %s19 = sphi 0, %s19
    %s21 = sphi 0, %s19
    %s22 = sphi 0, %s21
    %s36 = sphi 0, %s22
    %s42 = sphi 0, %s44
    %s45 = sphi 0, %s42
    %s46 = sphi 0, %s45
    %s62 = sphi 0, %s46
    %s66 = sphi 0, %s66
    %s68 = sphi 0, %s66
    %s69 = sphi 0, %s68
    %s83 = sphi 0, %s69
    %s87 = sphi 0, %s87
    %s89 = sphi 0, %s87
    %s90 = sphi 0, %s89
    %s104 = sphi 0, %s90
    %s108 = sphi 0, %s108
    %s110 = sphi 0, %s108
    %s111 = sphi 0, %s110
    %s125 = sphi 0, %s111
    %s131 = sphi 0, %s133
    %s134 = sphi 0, %s131
    %s135 = sphi 0, %s134
    %s151 = sphi 0, %s135
  $region4: #{run.1} parent=0 // loop_header_branch
    %14 = sbr.rel (%p12) target = $region8
  $region5: #{run.1} parent=0 // loop_body
    %s16 = ssub.s32 %s11, 1
    %s17 = ssub.s32 %s11, 2
    %s18 = sadd.s32 %s11, 1
    %s20 = sadd.s32 %s19, 1
    %p23 = scmp.eq.s32.totalorder %s11, 15
    %p24 = scmp.ne.s32.totalorder %s19, %s21
    %p25 = scmp.eq.s32.totalorder %s11, 0
    %p26 = por %p24, %p25
    %p27 = scmp.ne.s32.totalorder %s19, %s21
    %p28 = scmp.eq.s32.totalorder %s16, 15
    %p29 = por %p27, %p28
    %p30 = scmp.ne.s32.totalorder %s21, %s22
    %p31 = scmp.eq.s32.totalorder %s16, 0
    %p32 = por %p30, %p31
    %p33 = scmp.ne.s32.totalorder %s21, %s22
    %p34 = scmp.eq.s32.totalorder %s17, 15
    %p35 = por %p33, %p34
    %p37 = scmp.ne.s32.totalorder %s22, %s36
    %p38 = scmp.eq.s32.totalorder %s17, 0
    %p39 = por %p37, %p38
    %s40 = ssub.s32 %s11, %s18
    %p41 = scmp.eq.s32.totalorder %s40, 0
    %s43 = sadd.s32 %s42, 1
    %s44 = scalar_select %p41, %s42, %s43
    %p47 = pneg %p41
    %p48 = scmp.eq.s32.totalorder %s11, 15
    %p49 = por %p47, %p48
    %p50 = scmp.ne.s32.totalorder %s42, %s45
    %p51 = scmp.eq.s32.totalorder %s11, 0
    %p52 = por %p50, %p51
    %p53 = scmp.ne.s32.totalorder %s42, %s45
    %p54 = scmp.eq.s32.totalorder %s16, 15
    %p55 = por %p53, %p54
    %p56 = scmp.ne.s32.totalorder %s45, %s46
    %p57 = scmp.eq.s32.totalorder %s16, 0
    %p58 = por %p56, %p57
    %p59 = scmp.ne.s32.totalorder %s45, %s46
    %p60 = scmp.eq.s32.totalorder %s17, 15
    %p61 = por %p59, %p60
    %p63 = scmp.ne.s32.totalorder %s46, %s62
    %p64 = scmp.eq.s32.totalorder %s17, 0
    %p65 = por %p63, %p64
    %s67 = sadd.s32 %s66, 1
    %p70 = scmp.eq.s32.totalorder %s11, 15
    %p71 = scmp.ne.s32.totalorder %s66, %s68
    %p72 = scmp.eq.s32.totalorder %s11, 0
    %p73 = por %p71, %p72
    %p74 = scmp.ne.s32.totalorder %s66, %s68
    %p75 = scmp.eq.s32.totalorder %s16, 15
    %p76 = por %p74, %p75
    %p77 = scmp.ne.s32.totalorder %s68, %s69
    %p78 = scmp.eq.s32.totalorder %s16, 0
    %p79 = por %p77, %p78
    %p80 = scmp.ne.s32.totalorder %s68, %s69
    %p81 = scmp.eq.s32.totalorder %s17, 15
    %p82 = por %p80, %p81
    %p84 = scmp.ne.s32.totalorder %s69, %s83
    %p85 = scmp.eq.s32.totalorder %s17, 0
    %p86 = por %p84, %p85
    %s88 = sadd.s32 %s87, 1
    %p91 = scmp.eq.s32.totalorder %s11, 15
    %p92 = scmp.ne.s32.totalorder %s87, %s89
    %p93 = scmp.eq.s32.totalorder %s11, 0
    %p94 = por %p92, %p93
    %p95 = scmp.ne.s32.totalorder %s87, %s89
    %p96 = scmp.eq.s32.totalorder %s16, 15
    %p97 = por %p95, %p96
    %p98 = scmp.ne.s32.totalorder %s89, %s90
    %p99 = scmp.eq.s32.totalorder %s16, 0
    %p100 = por %p98, %p99
    %p101 = scmp.ne.s32.totalorder %s89, %s90
    %p102 = scmp.eq.s32.totalorder %s17, 15
    %p103 = por %p101, %p102
    %p105 = scmp.ne.s32.totalorder %s90, %s104
    %p106 = scmp.eq.s32.totalorder %s17, 0
    %p107 = por %p105, %p106
    %s109 = sadd.s32 %s108, 1
    %p112 = scmp.eq.s32.totalorder %s11, 15
    %p113 = scmp.ne.s32.totalorder %s108, %s110
    %p114 = scmp.eq.s32.totalorder %s11, 0
    %p115 = por %p113, %p114
    %p116 = scmp.ne.s32.totalorder %s108, %s110
    %p117 = scmp.eq.s32.totalorder %s16, 15
    %p118 = por %p116, %p117
    %p119 = scmp.ne.s32.totalorder %s110, %s111
    %p120 = scmp.eq.s32.totalorder %s16, 0
    %p121 = por %p119, %p120
    %p122 = scmp.ne.s32.totalorder %s110, %s111
    %p123 = scmp.eq.s32.totalorder %s17, 15
    %p124 = por %p122, %p123
    %p126 = scmp.ne.s32.totalorder %s111, %s125
    %p127 = scmp.eq.s32.totalorder %s17, 0
    %p128 = por %p126, %p127
    %s129 = ssub.s32 %s11, %s18
    %p130 = scmp.eq.s32.totalorder %s129, 0
    %s132 = sadd.s32 %s131, 1
    %s133 = scalar_select %p130, %s131, %s132
    %p136 = pneg %p130
    %p137 = scmp.eq.s32.totalorder %s11, 15
    %p138 = por %p136, %p137
    %p139 = scmp.ne.s32.totalorder %s131, %s134
    %p140 = scmp.eq.s32.totalorder %s11, 0
    %p141 = por %p139, %p140
    %p142 = scmp.ne.s32.totalorder %s131, %s134
    %p143 = scmp.eq.s32.totalorder %s16, 15
    %p144 = por %p142, %p143
    %p145 = scmp.ne.s32.totalorder %s134, %s135
    %p146 = scmp.eq.s32.totalorder %s16, 0
    %p147 = por %p145, %p146
    %p148 = scmp.ne.s32.totalorder %s134, %s135
    %p149 = scmp.eq.s32.totalorder %s17, 15
    %p150 = por %p148, %p149
    %p152 = scmp.ne.s32.totalorder %s135, %s151
    %p153 = scmp.eq.s32.totalorder %s17, 0
    %p154 = por %p152, %p153
    %p155 = scmp.le.s32.totalorder 1, %s11
    %p156 = scmp.lt.s32.totalorder %s11, 17
    %p157 = pnand %p155, %p156
    %p158 = pneg %p157
    // Predicated region
    $region9: #{run.1} parent=5 // pred_check
      _
    $region10: #{run.1} parent=5 // pred_check_branch
      %160 = sbr.rel (%p157) target = $region12
    $region11: #{run.1} parent=5 // pred_region
      %s161 = ssub.s32 %s11, 1
      // Predicated region
      $region13: #{run.1} parent=11 // pred_check
        %p162 = pneg %p32
      $region14: #{run.1} parent=11 // pred_check_branch
        %164 = sbr.rel (%p162) target = $region16
      $region15: #{run.1} parent=11 // pred_region
        _
      $region16: #{run.1} parent=11 // pred_fallthru
        _
      // Predicated region
      $region17: #{run.1} parent=11 // pred_check
        %p165 = pneg %p79
      $region18: #{run.1} parent=11 // pred_check_branch
        %167 = sbr.rel (%p165) target = $region20
      $region19: #{run.1} parent=11 // pred_region
        _
      $region20: #{run.1} parent=11 // pred_fallthru
        _
      // Predicated region
      $region21: #{run.1} parent=11 // pred_check
        %p168 = pneg %p100
      $region22: #{run.1} parent=11 // pred_check_branch
        %170 = sbr.rel (%p168) target = $region24
      $region23: #{run.1} parent=11 // pred_region
        _
      $region24: #{run.1} parent=11 // pred_fallthru
        _
      // Predicated region
      $region25: #{run.1} parent=11 // pred_check
        %p171 = pneg %p121
      $region26: #{run.1} parent=11 // pred_check_branch
        %173 = sbr.rel (%p171) target = $region28
      $region27: #{run.1} parent=11 // pred_region
        _
      $region28: #{run.1} parent=11 // pred_fallthru
        _
    $region12: #{run.1} parent=5 // pred_fallthru
      _
    %p174 = scmp.lt.s32.totalorder %s11, 16
    // Predicated region
    $region29: #{run.1} parent=5 // pred_check
      %p175 = pneg %p174
    $region30: #{run.1} parent=5 // pred_check_branch
      %177 = sbr.rel (%p175) target = $region32
    $region31: #{run.1} parent=5 // pred_region
      // Predicated region
      $region33: #{run.1} parent=31 // pred_check
        %p178 = pneg %p52
      $region34: #{run.1} parent=31 // pred_check_branch
        %180 = sbr.rel (%p178) target = $region36
      $region35: #{run.1} parent=31 // pred_region
        %p181 = scmp.lt.s32.totalorder %s11, 15
        %s182 = scalar_select %p181, %s11, 15
        %s183 = smul.addr %s182, 2
        %s184 = scalar_lea.vmem %s1, %s183
      $region36: #{run.1} parent=31 // pred_fallthru
        _
    $region32: #{run.1} parent=5 // pred_fallthru
      _
    %p185 = scmp.le.s32.totalorder 1, %s11
    %p186 = scmp.lt.s32.totalorder %s11, 17
    %p187 = pnand %p185, %p186
    %p188 = pneg %p187
    // Predicated region
    $region37: #{run.1} parent=5 // pred_check
      _
    $region38: #{run.1} parent=5 // pred_check_branch
      %190 = sbr.rel (%p187) target = $region40
    $region39: #{run.1} parent=5 // pred_region
      %s191 = ssub.s32 %s11, 1
      %p192 = pneg %p32
      %p193 = pneg %p29
      %p194 = scmp.lt.s32.totalorder %s16, 15
      %s195 = scalar_select %p194, %s16, 15
      %s196 = smul.addr %s195, 2
      %s197 = scalar_lea.vmem %s1, %s196
      %p198 = pneg %p58
      %p199 = pneg %p55
      %p200 = pneg %p79
      %p201 = pneg %p76
      %p202 = pneg %p100
      %p203 = pneg %p97
      %p204 = pneg %p121
      %p205 = pneg %p118
      %p206 = pneg %p147
      %p207 = pneg %p144
      %p208 = scmp.lt.s32.totalorder %s16, 15
      %s209 = scalar_select %p208, %s16, 15
      %s210 = smul.addr %s209, 2
      %s211 = scalar_lea.vmem %s5, %s210
      %p212 = scmp.lt.s32.totalorder %s16, 15
      %s213 = scalar_select %p212, %s16, 15
      %s214 = smul.addr %s213, 2
      %s215 = scalar_lea.vmem %s1, %s214
      %p216 = scmp.lt.s32.totalorder %s16, 15
      %s217 = scalar_select %p216, %s16, 15
      %s218 = smul.addr %s217, 2
      %s219 = scalar_lea.vmem %s5, %s218
      %p220 = scmp.eq.s32.totalorder %s16, 0
      // Predicated region
      $region41: #{run.1} parent=39 // pred_check
        %p221 = pneg %p220
      $region42: #{run.1} parent=39 // pred_check_branch
        %223 = sbr.rel (%p221) target = $region44
      $region43: #{run.1} parent=39 // pred_region
        %v224 = vld [vmem:[%s0] sm:$0x3]
        %vm225 = vcmask 58368
        %226 = vst.msk [vmem:[#allocation2] sm:$0x3] %vm225, %v224
      $region44: #{run.1} parent=39 // pred_fallthru
        _
      %v227 = vld [vmem:[%s215] sm:$0x3]
      %229 = vrot.lane.b32.xlu0 %v227, 8
      %v230 = vpop.permute.xlu0 %229
      %vm232 = vcmask 91200
      %233 = vst.msk [vmem:[#allocation2] sm:$0x3] %vm232, %v230
      %v234 = vld [vmem:[#allocation2] sm:$0x3]
      %v235 = vld [vmem:[%s2] sm:$0xff]
      %v236 = vld [vmem:[%s2 + $0x8] sm:$0xf]
      %vm237 = vcmask 97280
      %v239 = vsel %vm237, %v234, 0
      %vm241 = vcmask 1043456
      %v243 = vsel %vm241, %v236, 0
      %245 = vmatprep.subr.mxu0 0.0
      %246 = vmatpush1.msra.mxu0 0.0
      %247 = vmatprep.subr.mxu0 0.0
      %248 = vmatpush1.msra.mxu0 0.0
      %249 = vmatprep.subr.mxu0 0.0
      %250 = vmatpush1.msra.mxu0 0.0
      %251 = vmatprep.subr.mxu0 0.0
      %252 = vmatpush1.msra.mxu0 0.0
      %253 = vmatprep.subr.mxu0 0.0
      %254 = vmatpush1.msra.mxu0 0.0
      %255 = vmatprep.subr.mxu0 0.0
      %256 = vmatpush1.msra.mxu0 0.0
      %257 = vmatprep.subr.mxu0 0.0
      %258 = vmatpush1.msra.mxu0 0.0
      %259 = vmatprep.subr.mxu0 0.0
      %260 = vmatpush1.msra.mxu0 0.0
      %261 = vmatprep.subr.mxu0 0.0
      %262 = vmatpush1.msra.mxu0 0.0
      %263 = vmatprep.subr.mxu0 0.0
      %264 = vmatpush1.msra.mxu0 0.0
      %265 = vmatprep.subr.mxu0 0.0
      %266 = vmatpush1.msra.mxu0 0.0
      %267 = vmatprep.subr.mxu0 0.0
      %268 = vmatpush1.msra.mxu0 0.0
      %269 = vmatprep.subr.mxu0 0.0
      %270 = vmatpush1.msra.mxu0 0.0
      %271 = vmatprep.subr.mxu0 0.0
      %272 = vmatpush1.msra.mxu0 0.0
      %273 = vmatprep.subr.mxu0 0.0
      %274 = vmatpush1.msra.mxu0 %v243
      %275 = vmatprep.subr.mxu0 0.0
      %276 = vmatpush1.msra.mxu0 %v235
      %277 = vmatprep.subr.mxu0 0.0
      %278 = vmatpush2.msra.mxu0 0.0
      %279 = vmatprep.subr.mxu0 0.0
      %280 = vmatpush2.msra.mxu0 0.0
      %281 = vmatprep.subr.mxu0 0.0
      %282 = vmatpush2.msra.mxu0 0.0
      %283 = vmatprep.subr.mxu0 0.0
      %284 = vmatpush2.msra.mxu0 0.0
      %285 = vmatprep.subr.mxu0 0.0
      %286 = vmatpush2.msra.mxu0 0.0
      %287 = vmatprep.subr.mxu0 0.0
      %288 = vmatpush2.msra.mxu0 0.0
      %289 = vmatprep.subr.mxu0 0.0
      %290 = vmatpush2.msra.mxu0 0.0
      %291 = vmatprep.subr.mxu0 0.0
      %292 = vmatpush2.msra.mxu0 0.0
      %293 = vmatprep.subr.mxu0 0.0
      %294 = vmatpush2.msra.mxu0 0.0
      %295 = vmatprep.subr.mxu0 0.0
      %296 = vmatpush2.msra.mxu0 0.0
      %297 = vmatprep.subr.mxu0 0.0
      %298 = vmatpush2.msra.mxu0 0.0
      %299 = vmatprep.subr.mxu0 0.0
      %300 = vmatpush2.msra.mxu0 0.0
      %301 = vmatprep.subr.mxu0 0.0
      %302 = vmatpush2.msra.mxu0 0.0
      %303 = vmatprep.subr.mxu0 0.0
      %304 = vmatpush2.msra.mxu0 0.0
      %305 = vmatprep.subr.mxu0 0.0
      %306 = vmatpush2.msra.mxu0 0.0
      %307 = vmatprep.subr.mxu0 0.0
      %308 = vmatpush2.msra.mxu0 0.0
      %309 = vmatprep.mubr.f32.mxu0 0.0
      %310 = vmatmul.mubr.f32.gmra.mxu0 %v239
      %v311 = vpop.f32.mrf.mxu0
      %v312 = vadd.f32 0.0, %v311
      %v313 = vpop.f32.mrf.mxu0
      %314 = vdwg.mxu0
      %v315 = vlaneseq
      %v316 = vand.u32 %v315, 127
      %v317 = vld [vmem:[%s3] sm:$0x1]
      %v318 = vlaneseq
      %v319 = vshrl.u32 %v318, 7
      %v320 = vsub.s32 0, %v319
      %v321 = vrot.slane %v317, %v320
      %v322 = vmul.f32 %v321, 0.0
      %vm323 = vcmask 64512
      %v324 = vsel %vm323, %v322, 0.0
      %325 = vadd.xlane.f32.xlu0 %v324
      %v326 = vpop.xlane.xlu0 %325
      %v327 = vadd.f32 %v312, %v326
      %v328 = vtanh.pop %v327
      %vm329 = vcmp.eq.s32.totalorder %v316, 0
      %331 = vset.pattern.permute.xlu0 0
      %332 = vperm.xlu0 %331, %v328
      %v333 = vpop.permute.xlu0 %332
      %v335 = vsel %vm329, %v333, 0.0
      %v336 = vld [vmem:[%s4] sm:$0x1]
      %v337 = vlaneseq
      %v338 = vshrl.u32 %v337, 7
      %v339 = vsub.s32 0, %v338
      %v340 = vrot.slane %v336, %v339
      %v341 = vmul.f32 %v333, %v340
      %343 = vrot.lane.b32.xlu0 %v341, 8
      %v344 = vpop.permute.xlu0 %343
      %v346 = vadd.f32 %v312, %v344
      %v347 = vld [vmem:[%s3 + $0x1] sm:$0x1]
      %v348 = vlaneseq
      %v349 = vshrl.u32 %v348, 7
      %v350 = vsub.s32 0, %v349
      %v351 = vrot.slane %v347, %v350
      %v352 = vmul.f32 %v351, %v335
      %vm353 = vcmask 58368
      %v354 = vsel %vm353, %v352, 0.0
      %355 = vadd.xlane.f32.xlu0 %v354
      %v356 = vpop.xlane.xlu0 %355
      %v357 = vadd.f32 %v312, %v356
      %v358 = vtanh.pop %v357
      %vm359 = vcmp.eq.s32.totalorder %v316, 1
      %361 = vset.pattern.permute.xlu0 1
      %362 = vperm.xlu0 %361, %v358
      %v363 = vpop.permute.xlu0 %362
      %v365 = vsel %vm359, %v363, %v335
      %v366 = vld [vmem:[%s4 + $0x1] sm:$0x1]
      %v367 = vlaneseq
      %v368 = vshrl.u32 %v367, 7
      %v369 = vsub.s32 0, %v368
      %v370 = vrot.slane %v366, %v369
      %v371 = vmul.f32 %v363, %v370
      %373 = vrot.lane.b32.xlu0 %v371, 8
      %v374 = vpop.permute.xlu0 %373
      %v376 = vadd.f32 %v346, %v374
      %v377 = vld [vmem:[%s3 + $0x2] sm:$0x1]
      %v378 = vlaneseq
      %v379 = vshrl.u32 %v378, 7
      %v380 = vsub.s32 0, %v379
      %v381 = vrot.slane %v377, %v380
      %v382 = vmul.f32 %v381, %v365
      %v383 = vsel %vm353, %v382, 0.0
      %384 = vadd.xlane.f32.xlu0 %v383
      %v385 = vpop.xlane.xlu0 %384
      %v386 = vadd.f32 %v312, %v385
      %v387 = vtanh.pop %v386
      %vm388 = vcmp.eq.s32.totalorder %v316, 2
      %390 = vset.pattern.permute.xlu0 2
      %391 = vperm.xlu0 %390, %v387
      %v392 = vpop.permute.xlu0 %391
      %v394 = vsel %vm388, %v392, %v365
      %v395 = vld [vmem:[%s4 + $0x2] sm:$0x1]
      %v396 = vlaneseq
      %v397 = vshrl.u32 %v396, 7
      %v398 = vsub.s32 0, %v397
      %v399 = vrot.slane %v395, %v398
      %v400 = vmul.f32 %v392, %v399
      %402 = vrot.lane.b32.xlu0 %v400, 8
      %v403 = vpop.permute.xlu0 %402
      %v405 = vadd.f32 %v376, %v403
      %v406 = vld [vmem:[%s3 + $0x3] sm:$0x1]
      %v407 = vlaneseq
      %v408 = vshrl.u32 %v407, 7
      %v409 = vsub.s32 0, %v408
      %v410 = vrot.slane %v406, %v409
      %v411 = vmul.f32 %v410, %v394
      %v412 = vsel %vm353, %v411, 0.0
      %413 = vadd.xlane.f32.xlu0 %v412
      %v414 = vpop.xlane.xlu0 %413
      %v415 = vadd.f32 %v312, %v414
      %v416 = vtanh.pop %v415
      %vm417 = vcmp.eq.s32.totalorder %v316, 3
      %419 = vset.pattern.permute.xlu0 3
      %420 = vperm.xlu0 %419, %v416
      %v421 = vpop.permute.xlu0 %420
      %v423 = vsel %vm417, %v421, %v394
      %v424 = vld [vmem:[%s4 + $0x3] sm:$0x1]
      %v425 = vlaneseq
      %v426 = vshrl.u32 %v425, 7
      %v427 = vsub.s32 0, %v426
      %v428 = vrot.slane %v424, %v427
      %v429 = vmul.f32 %v421, %v428
      %431 = vrot.lane.b32.xlu0 %v429, 8
      %v432 = vpop.permute.xlu0 %431
      %v434 = vadd.f32 %v405, %v432
      %v435 = vld [vmem:[%s3 + $0x4] sm:$0x1]
      %v436 = vlaneseq
      %v437 = vshrl.u32 %v436, 7
      %v438 = vsub.s32 0, %v437
      %v439 = vrot.slane %v435, %v438
      %v440 = vmul.f32 %v439, %v423
      %v441 = vsel %vm353, %v440, 0.0
      %442 = vadd.xlane.f32.xlu0 %v441
      %v443 = vpop.xlane.xlu0 %442
      %v444 = vadd.f32 %v312, %v443
      %v445 = vtanh.pop %v444
      %vm446 = vcmp.eq.s32.totalorder %v316, 4
      %448 = vset.pattern.permute.xlu0 4
      %449 = vperm.xlu0 %448, %v445
      %v450 = vpop.permute.xlu0 %449
      %v452 = vsel %vm446, %v450, %v423
      %v453 = vld [vmem:[%s4 + $0x4] sm:$0x1]
      %v454 = vlaneseq
      %v455 = vshrl.u32 %v454, 7
      %v456 = vsub.s32 0, %v455
      %v457 = vrot.slane %v453, %v456
      %v458 = vmul.f32 %v450, %v457
      %460 = vrot.lane.b32.xlu0 %v458, 8
      %v461 = vpop.permute.xlu0 %460
      %v463 = vadd.f32 %v434, %v461
      %v464 = vld [vmem:[%s3 + $0x5] sm:$0x1]
      %v465 = vlaneseq
      %v466 = vshrl.u32 %v465, 7
      %v467 = vsub.s32 0, %v466
      %v468 = vrot.slane %v464, %v467
      %v469 = vmul.f32 %v468, %v452
      %v470 = vsel %vm353, %v469, 0.0
      %471 = vadd.xlane.f32.xlu0 %v470
      %v472 = vpop.xlane.xlu0 %471
      %v473 = vadd.f32 %v312, %v472
      %v474 = vtanh.pop %v473
      %vm475 = vcmp.eq.s32.totalorder %v316, 5
      %477 = vset.pattern.permute.xlu0 5
      %478 = vperm.xlu0 %477, %v474
      %v479 = vpop.permute.xlu0 %478
      %v481 = vsel %vm475, %v479, %v452
      %v482 = vld [vmem:[%s4 + $0x5] sm:$0x1]
      %v483 = vlaneseq
      %v484 = vshrl.u32 %v483, 7
      %v485 = vsub.s32 0, %v484
      %v486 = vrot.slane %v482, %v485
      %v487 = vmul.f32 %v479, %v486
      %489 = vrot.lane.b32.xlu0 %v487, 8
      %v490 = vpop.permute.xlu0 %489
      %v492 = vadd.f32 %v463, %v490
      %v493 = vld [vmem:[%s3 + $0x6] sm:$0x1]
      %v494 = vlaneseq
      %v495 = vshrl.u32 %v494, 7
      %v496 = vsub.s32 0, %v495
      %v497 = vrot.slane %v493, %v496
      %v498 = vmul.f32 %v497, %v481
      %v499 = vsel %vm353, %v498, 0.0
      %500 = vadd.xlane.f32.xlu0 %v499
      %v501 = vpop.xlane.xlu0 %500
      %v502 = vadd.f32 %v312, %v501
      %v503 = vtanh.pop %v502
      %vm504 = vcmp.eq.s32.totalorder %v316, 6
      %506 = vset.pattern.permute.xlu0 6
      %507 = vperm.xlu0 %506, %v503
      %v508 = vpop.permute.xlu0 %507
      %v510 = vsel %vm504, %v508, %v481
      %v511 = vld [vmem:[%s4 + $0x6] sm:$0x1]
      %v512 = vlaneseq
      %v513 = vshrl.u32 %v512, 7
      %v514 = vsub.s32 0, %v513
      %v515 = vrot.slane %v511, %v514
      %v516 = vmul.f32 %v508, %v515
      %518 = vrot.lane.b32.xlu0 %v516, 8
      %v519 = vpop.permute.xlu0 %518
      %v521 = vadd.f32 %v492, %v519
      %v522 = vld [vmem:[%s3 + $0x7] sm:$0x1]
      %v523 = vlaneseq
      %v524 = vshrl.u32 %v523, 7
      %v525 = vsub.s32 0, %v524
      %v526 = vrot.slane %v522, %v525
      %v527 = vmul.f32 %v526, %v510
      %v528 = vsel %vm353, %v527, 0.0
      %529 = vadd.xlane.f32.xlu0 %v528
      %v530 = vpop.xlane.xlu0 %529
      %v531 = vadd.f32 %v312, %v530
      %v532 = vtanh.pop %v531
      %v533 = vld [vmem:[%s4 + $0x7] sm:$0x1]
      %535 = vset.pattern.permute.xlu0 7
      %536 = vperm.xlu0 %535, %v532
      %v537 = vpop.permute.xlu0 %536
      %v539 = vlaneseq
      %v540 = vshrl.u32 %v539, 7
      %v541 = vsub.s32 0, %v540
      %v542 = vrot.slane %v533, %v541
      %v543 = vmul.f32 %v537, %v542
      %545 = vrot.lane.b32.xlu0 %v543, 8
      %v546 = vpop.permute.xlu0 %545
      %v548 = vadd.f32 %v521, %v546
      %550 = vrot.lane.b32.xlu0 %v548, 120
      %v551 = vpop.permute.xlu0 %550
      %vm553 = vcmask 91136
      %554 = vst.msk [vmem:[%s219] sm:$0x3] %vm553, %v551
      %555 = vst.msk [vmem:[#allocation2] sm:$0x3] %vm353, %v551
      %p556 = scmp.lt.s32.totalorder %s16, 15
      %s557 = scalar_select %p556, %s16, 15
      %s558 = smul.addr %s557, 2
      %s559 = scalar_lea.vmem %s5, %s558
      // Predicated region
      $region45: #{run.1} parent=39 // pred_check
        %p560 = pneg %p144
      $region46: #{run.1} parent=39 // pred_check_branch
        %562 = sbr.rel (%p560) target = $region48
      $region47: #{run.1} parent=39 // pred_region
        _
      $region48: #{run.1} parent=39 // pred_fallthru
        _
    $region40: #{run.1} parent=5 // pred_fallthru
      _
    %p563 = scmp.le.s32.totalorder 2, %s11
    // Predicated region
    $region49: #{run.1} parent=5 // pred_check
      %p564 = pneg %p563
    $region50: #{run.1} parent=5 // pred_check_branch
      %566 = sbr.rel (%p564) target = $region52
    $region51: #{run.1} parent=5 // pred_region
      %s567 = ssub.s32 %s11, 2
      // Predicated region
      $region53: #{run.1} parent=51 // pred_check
        %p568 = pneg %p150
      $region54: #{run.1} parent=51 // pred_check_branch
        %570 = sbr.rel (%p568) target = $region56
      $region55: #{run.1} parent=51 // pred_region
        %p571 = scmp.lt.s32.totalorder %s17, 15
        %s572 = scalar_select %p571, %s17, 15
        %s573 = smul.addr %s572, 2
        %s574 = scalar_lea.vmem %s5, %s573
      $region56: #{run.1} parent=51 // pred_fallthru
        _
    $region52: #{run.1} parent=5 // pred_fallthru
      _
  $region6: #{run.1} parent=0 // loop_footer
    %s15 = sadd.s32 1, %s11
  $region7: #{run.1} parent=0 // loop_footer_branch
    %10 = sbr.rel target = $region3
  $region8: #{run.1} parent=0 // loop_exit
    _

</llo_original>
